<compile_context>
chip_gen: v7x
topology: tpu7x:2x2x1
jax: 0.10.0
libtpu: 0.0.40
codegen_flags: <defaults>
</compile_context>

<pallas_src>
import numpy as np
import jax
import jax.numpy as jnp
from jax.experimental import pallas as pl
from jax.experimental.pallas import tpu as pltpu


def _round_up(x, m):
    return ((x + m - 1) // m) * m


def _pick_tile(E, tile_e):
    """Tile: multiple of 8 sublanes, >=2 grid steps when E allows (v7x megacore)."""
    tile_e = max(8, _round_up(int(tile_e), 8))
    two_tile_cap = _round_up(max((E + 1) // 2, 8), 8)
    return min(tile_e, two_tile_cap, _round_up(max(E, 1), 8))


# ---------------------------------------------------------------------------
# Fused path: gather + concat + matmul all inside the kernel (small node table).
# ---------------------------------------------------------------------------
def _fused_kernel(adj_ref, efeat_ref, table_ref, w_ref, scores_ref, embeds_ref):
    # adj_ref: (TE, 2) i32; efeat_ref: (TE, F); table_ref: (N, D) resident;
    # w_ref: (2D+F, C) resident; scores_ref: (TE, C); embeds_ref: (TE, 2D+F).
    n_nodes = table_ref.shape[0]
    table = table_ref[...]

    # On-chip endpoint gather via one-hot matmul: compares are VPU work, the row
    # selection/reduction rides the MXU, so no HBM round trip for gathered rows.
    node_ids = jax.lax.broadcasted_iota(jnp.int32, (1, n_nodes), 1)   # (1, N)
    src = adj_ref[:, 0:1]                                             # (TE, 1)
    dst = adj_ref[:, 1:2]                                             # (TE, 1)
    onehot_src = (src == node_ids).astype(table.dtype)                # (TE, N)
    onehot_dst = (dst == node_ids).astype(table.dtype)                # (TE, N)
    h_src = jnp.dot(onehot_src, table, preferred_element_type=jnp.float32)
    h_dst = jnp.dot(onehot_dst, table, preferred_element_type=jnp.float32)

    # edge_embeds = concat(h_src, h_dst, efeat): built in registers, stored once
    # (single store per vreg row-group instead of three lane-masked column stores).
    packed = jnp.concatenate([h_src, h_dst, efeat_ref[...]], axis=-1)  # (TE, 2D+F)
    embeds_ref[...] = packed.astype(embeds_ref.dtype)

    # scores = edge_embeds @ weight.T : single fused matmul against the resident weight.
    scores = jnp.dot(packed, w_ref[...], preferred_element_type=jnp.float32)
    scores_ref[...] = scores.astype(scores_ref.dtype)


def _forward_fused(node_embeds, adj, edge_features, weight_t, tile_e):
    E = adj.shape[0]
    N, D = node_embeds.shape
    F = edge_features.shape[1]
    feat_dim, C = weight_t.shape

    tile_e = _pick_tile(E, tile_e)
    e_pad = _round_up(E, tile_e)
    if e_pad != E:
        pad = e_pad - E
        adj = jnp.pad(adj, ((0, pad), (0, 0)))              # pad rows select node 0
        edge_features = jnp.pad(edge_features, ((0, pad), (0, 0)))

    num_tiles = e_pad // tile_e
    scores, edge_embeds = pl.pallas_call(
        _fused_kernel,
        out_shape=(
            jax.ShapeDtypeStruct((e_pad, C), jnp.float32),
            jax.ShapeDtypeStruct((e_pad, feat_dim), jnp.float32),
        ),
        grid_spec=pltpu.PrefetchScalarGridSpec(
            num_scalar_prefetch=0,
            grid=(num_tiles,),
            in_specs=[
                pl.BlockSpec((tile_e, 2), lambda i: (i, 0)),       # adj indices
                pl.BlockSpec((tile_e, F), lambda i: (i, 0)),       # edge features
                pl.BlockSpec((N, D), lambda i: (0, 0)),            # node table, resident
                pl.BlockSpec((feat_dim, C), lambda i: (0, 0)),     # fused weight.T, resident
            ],
            out_specs=(
                pl.BlockSpec((tile_e, C), lambda i: (i, 0)),
                pl.BlockSpec((tile_e, feat_dim), lambda i: (i, 0)),
            ),
        ),
        compiler_params=pltpu.CompilerParams(
            dimension_semantics=("parallel",),
            vmem_limit_bytes=32 * 1024 * 1024,
        ),
    )(adj, edge_features, node_embeds, weight_t)

    if e_pad != E:
        scores = scores[:E]
        edge_embeds = edge_embeds[:E]
    return scores, edge_embeds


# ---------------------------------------------------------------------------
# Fallback path for large node tables: XLA gather + lane-dense matmul-only kernel.
# ---------------------------------------------------------------------------
def _packed_kernel(x_ref, w_ref, scores_ref):
    scores_ref[...] = jnp.dot(
        x_ref[...], w_ref[...], preferred_element_type=jnp.float32
    ).astype(scores_ref.dtype)


def _forward_packed(node_embeds, adj, edge_features, weight_t, tile_e):
    E = adj.shape[0]
    feat_dim, C = weight_t.shape

    h_src = jnp.take(node_embeds, adj[:, 0], axis=0)
    h_dst = jnp.take(node_embeds, adj[:, 1], axis=0)
    # edge_embeds returned directly from the wrapper: no duplicate kernel write.
    edge_embeds = jnp.concatenate([h_src, h_dst, edge_features], axis=-1)  # (E, 2D+F)

    tile_e = _pick_tile(E, tile_e)
    e_pad = _round_up(E, tile_e)
    x = edge_embeds if e_pad == E else jnp.pad(edge_embeds, ((0, e_pad - E), (0, 0)))

    num_tiles = e_pad // tile_e
    scores = pl.pallas_call(
        _packed_kernel,
        out_shape=jax.ShapeDtypeStruct((e_pad, C), jnp.float32),
        grid_spec=pltpu.PrefetchScalarGridSpec(
            num_scalar_prefetch=0,
            grid=(num_tiles,),
            in_specs=[
                pl.BlockSpec((tile_e, feat_dim), lambda i: (i, 0)),
                pl.BlockSpec((feat_dim, C), lambda i: (0, 0)),     # resident weight.T
            ],
            out_specs=pl.BlockSpec((tile_e, C), lambda i: (i, 0)),
        ),
        compiler_params=pltpu.CompilerParams(
            dimension_semantics=("parallel",),
            vmem_limit_bytes=32 * 1024 * 1024,
        ),
    )(x, weight_t)

    return scores[:E], edge_embeds


def egraphsage_forward(node_embeds, adj, edge_features, weight, *,
                       tile_e=2048, fused_gather_max_nodes=512):
    """node_embeds: (N, D) f32; adj: (E, 2) i32; edge_features: (E, F) f32;
    weight: (C, 2D+F) f32.  Returns (scores (E, C), edge_embeds (E, 2D+F))."""
    N, D = node_embeds.shape
    F = edge_features.shape[1]
    C = weight.shape[0]
    feat_dim = 2 * D + F
    assert weight.shape[1] == feat_dim

    weight_t = weight.T  # (2D+F, C): pre-transposed once, kept resident in VMEM.

    # TODO(synk): an in-kernel dynamic row-gather (jnp.take against the VMEM-resident
    # table) would avoid the one-hot cost for large N, but Mosaic's dynamic gather
    # lowering is too restricted to rely on; above the threshold we fall back to an
    # XLA gather + a matmul-only kernel.
    if N <= fused_gather_max_nodes:
        return _forward_fused(node_embeds, adj, edge_features, weight_t, tile_e)
    return _forward_packed(node_embeds, adj, edge_features, weight_t, tile_e)


if __name__ == "__main__":
    # Shapes consistent with the module's __init__: enc.embed_dim=32, edge feature
    # dim=16, num_classes=4, residual=True  =>  weight (4, 2*32+16) = (4, 80).
    N_NODES = 16   # unique nodes touched by the edge batch (rows of enc(nodes_id).t())
    D = 32
    F = 16
    C = 4
    E = 36         # ragged edge count: exercises padding + the two-tile grid split

    key = jax.random.PRNGKey(0)
    k_nodes, k_adj, k_efeat, k_w = jax.random.split(key, 4)

    # TODO(synk): the GraphSAGE encoder `enc` and the host-side node_map/unique_map
    # set/dict bookkeeping are external index plumbing; modeled here as a precomputed
    # node table plus integer adjacency.
    node_embeds = jax.random.normal(k_nodes, (N_NODES, D), dtype=jnp.float32)
    adj = jax.random.randint(k_adj, (E, 2), 0, N_NODES, dtype=jnp.int32)
    edge_features = jax.random.normal(k_efeat, (E, F), dtype=jnp.float32)

    feat_dim = 2 * D + F
    bound = float(np.sqrt(6.0 / (C + feat_dim)))   # deterministic xavier_uniform_
    weight = jax.random.uniform(k_w, (C, feat_dim), minval=-bound, maxval=bound,
                                dtype=jnp.float32)

    # Pure-JAX reference (same math as the torch forward).
    h_src_ref = node_embeds[adj[:, 0]]
    h_dst_ref = node_embeds[adj[:, 1]]
    embeds_ref = jnp.concatenate([h_src_ref, h_dst_ref, edge_features], axis=-1)
    scores_ref = embeds_ref @ weight.T

    # Fused-gather path (small node table — the common EGraphSage minibatch regime).
    scores, edge_embeds = egraphsage_forward(node_embeds, adj, edge_features, weight)
    scores = jax.block_until_ready(scores)
    edge_embeds = jax.block_until_ready(edge_embeds)
    assert scores.shape == (E, C) and edge_embeds.shape == (E, feat_dim)
    np.testing.assert_allclose(np.asarray(edge_embeds), np.asarray(embeds_ref),
                               rtol=1e-5, atol=1e-5)
    np.testing.assert_allclose(np.asarray(scores), np.asarray(scores_ref),
                               rtol=1e-5, atol=1e-5)

    # Packed fallback path (forced), same semantics.
    scores2, edge_embeds2 = egraphsage_forward(node_embeds, adj, edge_features, weight,
                                               fused_gather_max_nodes=0)
    scores2 = jax.block_until_ready(scores2)
    edge_embeds2 = jax.block_until_ready(edge_embeds2)
    np.testing.assert_allclose(np.asarray(edge_embeds2), np.asarray(embeds_ref),
                               rtol=1e-5, atol=1e-5)
    np.testing.assert_allclose(np.asarray(scores2), np.asarray(scores_ref),
                               rtol=1e-5, atol=1e-5)

    print("KERNEL_OK")
</pallas_src>

<mosaic_0001>
module attributes {stable_mosaic.version = 11 : i64} {
  func.func @_fused_kernel(%arg0: i32, %arg1: memref<24x2xi32, #tpu.memory_space<vmem>>, %arg2: memref<24x16xf32, #tpu.memory_space<vmem>>, %arg3: memref<16x32xf32, #tpu.memory_space<vmem>>, %arg4: memref<80x4xf32, #tpu.memory_space<vmem>>, %arg5: memref<24x4xf32, #tpu.memory_space<vmem>>, %arg6: memref<24x80xf32, #tpu.memory_space<vmem>>) attributes {dimension_semantics = [#tpu.dimension_semantics<parallel>], iteration_bounds = array<i64: 2>, scalar_prefetch = 0 : i64, scratch_operands = 0 : i64, tpu.core_type = #tpu.core_type<tc>, window_params = [{transform_indices = @transform_0, window_bounds = array<i64: 24, 2>}, {transform_indices = @transform_1, window_bounds = array<i64: 24, 16>}, {pipeline_mode = #tpu.pipeline_mode<synchronous>, transform_indices = @transform_2, window_bounds = array<i64: 16, 32>}, {pipeline_mode = #tpu.pipeline_mode<synchronous>, transform_indices = @transform_3, window_bounds = array<i64: 80, 4>}, {transform_indices = @transform_4, window_bounds = array<i64: 24, 4>}, {transform_indices = @transform_5, window_bounds = array<i64: 24, 80>}]} {
    %c0 = arith.constant 0 : index
    %c0_0 = arith.constant 0 : index
    %0 = vector.load %arg3[%c0, %c0_0] : memref<16x32xf32, #tpu.memory_space<vmem>>, vector<16x32xf32>
    %1 = tpu.iota {dimensions = array<i32: 1>} : vector<1x16xi32>
    %c0_1 = arith.constant 0 : index
    %c0_2 = arith.constant 0 : index
    %2 = vector.load %arg1[%c0_1, %c0_2] : memref<24x2xi32, #tpu.memory_space<vmem>>, vector<24x1xi32>
    %c0_3 = arith.constant 0 : index
    %c1 = arith.constant 1 : index
    %3 = vector.load %arg1[%c0_3, %c1] : memref<24x2xi32, #tpu.memory_space<vmem>>, vector<24x1xi32>
    %4 = vector.broadcast %2 : vector<24x1xi32> to vector<24x16xi32>
    %5 = vector.broadcast %1 : vector<1x16xi32> to vector<24x16xi32>
    %6 = arith.cmpi eq, %4, %5 : vector<24x16xi32>
    %7 = arith.extui %6 : vector<24x16xi1> to vector<24x16xi32>
    %8 = arith.sitofp %7 : vector<24x16xi32> to vector<24x16xf32>
    %9 = vector.broadcast %3 : vector<24x1xi32> to vector<24x16xi32>
    %10 = vector.broadcast %1 : vector<1x16xi32> to vector<24x16xi32>
    %11 = arith.cmpi eq, %9, %10 : vector<24x16xi32>
    %12 = arith.extui %11 : vector<24x16xi1> to vector<24x16xi32>
    %13 = arith.sitofp %12 : vector<24x16xi32> to vector<24x16xf32>
    %cst = arith.constant dense<0.000000e+00> : vector<24x32xf32>
    %14 = tpu.matmul %8, %0, %cst {dimension_numbers = #tpu.dot_dimension_numbers<[1], [0], [0], [1], [0, 0, 1, 1], [], []>} : vector<24x16xf32>, vector<16x32xf32>, vector<24x32xf32> -> vector<24x32xf32>
    %cst_4 = arith.constant dense<0.000000e+00> : vector<24x32xf32>
    %15 = tpu.matmul %13, %0, %cst_4 {dimension_numbers = #tpu.dot_dimension_numbers<[1], [0], [0], [1], [0, 0, 1, 1], [], []>} : vector<24x16xf32>, vector<16x32xf32>, vector<24x32xf32> -> vector<24x32xf32>
    %c0_5 = arith.constant 0 : index
    %c0_6 = arith.constant 0 : index
    %16 = vector.load %arg2[%c0_5, %c0_6] : memref<24x16xf32, #tpu.memory_space<vmem>>, vector<24x16xf32>
    %17 = tpu.concatenate %14, %15, %16 in 1 : vector<24x32xf32>, vector<24x32xf32>, vector<24x16xf32> -> vector<24x80xf32>
    %c0_7 = arith.constant 0 : index
    %c0_8 = arith.constant 0 : index
    %18 = vector.load %arg6[%c0_7, %c0_8] : memref<24x80xf32, #tpu.memory_space<vmem>>, vector<24x80xf32>
    tpu.vector_store %arg6[%c0_7, %c0_8], %17 {strides = array<i32>} : memref<24x80xf32, #tpu.memory_space<vmem>>, vector<24x80xf32>,
    %c0_9 = arith.constant 0 : index
    %c0_10 = arith.constant 0 : index
    %19 = vector.load %arg4[%c0_9, %c0_10] : memref<80x4xf32, #tpu.memory_space<vmem>>, vector<80x4xf32>
    %cst_11 = arith.constant dense<0.000000e+00> : vector<24x4xf32>
    %20 = tpu.matmul %17, %19, %cst_11 {dimension_numbers = #tpu.dot_dimension_numbers<[1], [0], [0], [1], [0, 0, 1, 1], [], []>} : vector<24x80xf32>, vector<80x4xf32>, vector<24x4xf32> -> vector<24x4xf32>
    %c0_12 = arith.constant 0 : index
    %c0_13 = arith.constant 0 : index
    %21 = vector.load %arg5[%c0_12, %c0_13] : memref<24x4xf32, #tpu.memory_space<vmem>>, vector<24x4xf32>
    tpu.vector_store %arg5[%c0_12, %c0_13], %20 {strides = array<i32>} : memref<24x4xf32, #tpu.memory_space<vmem>>, vector<24x4xf32>,
    return
  }
  func.func @transform_0(%arg0: i32) -> (i32, i32) {
    %c0_i32 = arith.constant 0 : i32
    %c0_i32_0 = arith.constant 0 : i32
    return %arg0, %c0_i32 : i32, i32
  }
  func.func @transform_1(%arg0: i32) -> (i32, i32) {
    %c0_i32 = arith.constant 0 : i32
    %c0_i32_0 = arith.constant 0 : i32
    return %arg0, %c0_i32 : i32, i32
  }
  func.func @transform_2(%arg0: i32) -> (i32, i32) {
    %c0_i32 = arith.constant 0 : i32
    %c0_i32_0 = arith.constant 0 : i32
    %c0_i32_1 = arith.constant 0 : i32
    return %c0_i32, %c0_i32_0 : i32, i32
  }
  func.func @transform_3(%arg0: i32) -> (i32, i32) {
    %c0_i32 = arith.constant 0 : i32
    %c0_i32_0 = arith.constant 0 : i32
    %c0_i32_1 = arith.constant 0 : i32
    return %c0_i32, %c0_i32_0 : i32, i32
  }
  func.func @transform_4(%arg0: i32) -> (i32, i32) {
    %c0_i32 = arith.constant 0 : i32
    %c0_i32_0 = arith.constant 0 : i32
    return %arg0, %c0_i32 : i32, i32
  }
  func.func @transform_5(%arg0: i32) -> (i32, i32) {
    %c0_i32 = arith.constant 0 : i32
    %c0_i32_0 = arith.constant 0 : i32
    return %arg0, %c0_i32 : i32, i32
  }
}

</mosaic_0001>

<llo_original>
// kernel: tpu_custom_call.1
$region0: #{tpu_custom_call.1}
  #allocation0 [shape = 'u32[]', space=smem, size = 0x4, offset = 0x4, fixed_abs, tag = 'smem constant byte address 0x4 - core index']
  #allocation1 [shape = 'u32[144,128]{1,0:T(1,128)}', space=vmem, size = 0x12000, scoped, tag = 'internal scratch']
  %s0 = inlined_call_operand.vmem [shape: s32[48,2], index: 0, kind: input, shape index: {}]
  %s1 = inlined_call_operand.vmem [shape: f32[48,16], index: 1, kind: input, shape index: {}]
  %s2 = inlined_call_operand.vmem [shape: f32[16,32], index: 2, kind: input, shape index: {}]
  %s3 = inlined_call_operand.vmem [shape: f32[80,4], index: 3, kind: input, shape index: {}]
  %s4 = inlined_call_operand.vmem [shape: f32[48,4], index: 4, kind: output, shape index: {0}]
  %s5 = inlined_call_operand.hbm [shape: f32[48,80], index: 5, kind: output, shape index: {1}]
  %6 = xla_tuple %s4, %s5
  %s7 = sld [smem:[#allocation0]]
  $region57: #{tpu_custom_call.1} parent=0
    _
  %s9 = ssub.s32 1, %s7
  %s10 = scalar_select 0, %s9, %s7
  $region1: #{tpu_custom_call.1} parent=0
    #allocation2 [shape = 'u8[24576]{0}', space=vmem, size = 0x6000, scoped, tag = 'output window, operand 1']
    #allocation3 [shape = 's32[2]{0}', space=sflag, size = 0x8, scoped, tag = 'scoped memory for tpu_custom_call.1']
    %11 = vsyncpa [#allocation3], 0
    %s12 = scalar_lea.sflag [#allocation3], 1
    %13 = vsyncpa %s12, 0
    loop: start=0, step=1, limit=4
    $region2: #{tpu_custom_call.1} parent=1 // loop_pre_header
      _
    $region3: #{tpu_custom_call.1} parent=1 // loop_header
      %s15 = sphi 0, %s19
      %p16 = scmp.ge.s32.totalorder %s15, 4
      %s25 = sphi 0, %s27
      %s28 = sphi 0, %s25
      %s29 = sphi 0, %s28
      %s45 = sphi 0, %s29
      %s51 = sphi 0, %s53
      %s54 = sphi 0, %s51
      %s55 = sphi 0, %s54
      %s71 = sphi 0, %s55
      %s75 = sphi 0, %s75
      %s77 = sphi 0, %s75
      %s78 = sphi 0, %s77
      %s92 = sphi 0, %s78
      %s96 = sphi 0, %s96
      %s98 = sphi 0, %s96
      %s99 = sphi 0, %s98
      %s113 = sphi 0, %s99
      %s119 = sphi 0, %s121
      %s122 = sphi 0, %s119
      %s123 = sphi 0, %s122
      %s139 = sphi 0, %s123
      %s145 = sphi 0, %s147
      %s148 = sphi 0, %s145
      %s149 = sphi 0, %s148
      %s165 = sphi 0, %s149
    $region4: #{tpu_custom_call.1} parent=1 // loop_header_branch
      %18 = sbr.rel (%p16) target = $region8
    $region5: #{tpu_custom_call.1} parent=1 // loop_body
      %s20 = ssub.s32 %s15, 1
      %s21 = ssub.s32 %s15, 2
      %s22 = sadd.s32 %s15, 1
      %s23 = ssub.s32 %s15, %s22
      %p24 = scmp.eq.s32.totalorder %s23, 0
      %s26 = sadd.s32 %s25, 1
      %s27 = scalar_select %p24, %s25, %s26
      %p30 = pneg %p24
      %p31 = scmp.eq.s32.totalorder %s15, 1
      %p32 = por %p30, %p31
      %p33 = scmp.ne.s32.totalorder %s25, %s28
      %p34 = scmp.eq.s32.totalorder %s15, 0
      %p35 = por %p33, %p34
      %p36 = scmp.ne.s32.totalorder %s25, %s28
      %p37 = scmp.eq.s32.totalorder %s20, 1
      %p38 = por %p36, %p37
      %p39 = scmp.ne.s32.totalorder %s28, %s29
      %p40 = scmp.eq.s32.totalorder %s20, 0
      %p41 = por %p39, %p40
      %p42 = scmp.ne.s32.totalorder %s28, %s29
      %p43 = scmp.eq.s32.totalorder %s21, 1
      %p44 = por %p42, %p43
      %p46 = scmp.ne.s32.totalorder %s29, %s45
      %p47 = scmp.eq.s32.totalorder %s21, 0
      %p48 = por %p46, %p47
      %s49 = ssub.s32 %s15, %s22
      %p50 = scmp.eq.s32.totalorder %s49, 0
      %s52 = sadd.s32 %s51, 1
      %s53 = scalar_select %p50, %s51, %s52
      %p56 = pneg %p50
      %p57 = scmp.eq.s32.totalorder %s15, 1
      %p58 = por %p56, %p57
      %p59 = scmp.ne.s32.totalorder %s51, %s54
      %p60 = scmp.eq.s32.totalorder %s15, 0
      %p61 = por %p59, %p60
      %p62 = scmp.ne.s32.totalorder %s51, %s54
      %p63 = scmp.eq.s32.totalorder %s20, 1
      %p64 = por %p62, %p63
      %p65 = scmp.ne.s32.totalorder %s54, %s55
      %p66 = scmp.eq.s32.totalorder %s20, 0
      %p67 = por %p65, %p66
      %p68 = scmp.ne.s32.totalorder %s54, %s55
      %p69 = scmp.eq.s32.totalorder %s21, 1
      %p70 = por %p68, %p69
      %p72 = scmp.ne.s32.totalorder %s55, %s71
      %p73 = scmp.eq.s32.totalorder %s21, 0
      %p74 = por %p72, %p73
      %s76 = sadd.s32 %s75, 1
      %p79 = scmp.eq.s32.totalorder %s15, 1
      %p80 = scmp.ne.s32.totalorder %s75, %s77
      %p81 = scmp.eq.s32.totalorder %s15, 0
      %p82 = por %p80, %p81
      %p83 = scmp.ne.s32.totalorder %s75, %s77
      %p84 = scmp.eq.s32.totalorder %s20, 1
      %p85 = por %p83, %p84
      %p86 = scmp.ne.s32.totalorder %s77, %s78
      %p87 = scmp.eq.s32.totalorder %s20, 0
      %p88 = por %p86, %p87
      %p89 = scmp.ne.s32.totalorder %s77, %s78
      %p90 = scmp.eq.s32.totalorder %s21, 1
      %p91 = por %p89, %p90
      %p93 = scmp.ne.s32.totalorder %s78, %s92
      %p94 = scmp.eq.s32.totalorder %s21, 0
      %p95 = por %p93, %p94
      %s97 = sadd.s32 %s96, 1
      %p100 = scmp.eq.s32.totalorder %s15, 1
      %p101 = scmp.ne.s32.totalorder %s96, %s98
      %p102 = scmp.eq.s32.totalorder %s15, 0
      %p103 = por %p101, %p102
      %p104 = scmp.ne.s32.totalorder %s96, %s98
      %p105 = scmp.eq.s32.totalorder %s20, 1
      %p106 = por %p104, %p105
      %p107 = scmp.ne.s32.totalorder %s98, %s99
      %p108 = scmp.eq.s32.totalorder %s20, 0
      %p109 = por %p107, %p108
      %p110 = scmp.ne.s32.totalorder %s98, %s99
      %p111 = scmp.eq.s32.totalorder %s21, 1
      %p112 = por %p110, %p111
      %p114 = scmp.ne.s32.totalorder %s99, %s113
      %p115 = scmp.eq.s32.totalorder %s21, 0
      %p116 = por %p114, %p115
      %s117 = ssub.s32 %s15, %s22
      %p118 = scmp.eq.s32.totalorder %s117, 0
      %s120 = sadd.s32 %s119, 1
      %s121 = scalar_select %p118, %s119, %s120
      %p124 = pneg %p118
      %p125 = scmp.eq.s32.totalorder %s15, 1
      %p126 = por %p124, %p125
      %p127 = scmp.ne.s32.totalorder %s119, %s122
      %p128 = scmp.eq.s32.totalorder %s15, 0
      %p129 = por %p127, %p128
      %p130 = scmp.ne.s32.totalorder %s119, %s122
      %p131 = scmp.eq.s32.totalorder %s20, 1
      %p132 = por %p130, %p131
      %p133 = scmp.ne.s32.totalorder %s122, %s123
      %p134 = scmp.eq.s32.totalorder %s20, 0
      %p135 = por %p133, %p134
      %p136 = scmp.ne.s32.totalorder %s122, %s123
      %p137 = scmp.eq.s32.totalorder %s21, 1
      %p138 = por %p136, %p137
      %p140 = scmp.ne.s32.totalorder %s123, %s139
      %p141 = scmp.eq.s32.totalorder %s21, 0
      %p142 = por %p140, %p141
      %s143 = ssub.s32 %s15, %s22
      %p144 = scmp.eq.s32.totalorder %s143, 0
      %s146 = sadd.s32 %s145, 1
      %s147 = scalar_select %p144, %s145, %s146
      %p150 = pneg %p144
      %p151 = scmp.eq.s32.totalorder %s15, 1
      %p152 = por %p150, %p151
      %p153 = scmp.ne.s32.totalorder %s145, %s148
      %p154 = scmp.eq.s32.totalorder %s15, 0
      %p155 = por %p153, %p154
      %p156 = scmp.ne.s32.totalorder %s145, %s148
      %p157 = scmp.eq.s32.totalorder %s20, 1
      %p158 = por %p156, %p157
      %p159 = scmp.ne.s32.totalorder %s148, %s149
      %p160 = scmp.eq.s32.totalorder %s20, 0
      %p161 = por %p159, %p160
      %p162 = scmp.ne.s32.totalorder %s148, %s149
      %p163 = scmp.eq.s32.totalorder %s21, 1
      %p164 = por %p162, %p163
      %p166 = scmp.ne.s32.totalorder %s149, %s165
      %p167 = scmp.eq.s32.totalorder %s21, 0
      %p168 = por %p166, %p167
      %p169 = scmp.le.s32.totalorder 1, %s15
      %p170 = scmp.lt.s32.totalorder %s15, 3
      %p171 = pnand %p169, %p170
      %p172 = pneg %p171
      // Predicated region
      $region9: #{tpu_custom_call.1} parent=5 // pred_check
        _
      $region10: #{tpu_custom_call.1} parent=5 // pred_check_branch
        %174 = sbr.rel (%p171) target = $region12
      $region11: #{tpu_custom_call.1} parent=5 // pred_region
        %s175 = ssub.s32 %s15, 1
        // Predicated region
        $region13: #{tpu_custom_call.1} parent=11 // pred_check
          %p176 = pneg %p88
        $region14: #{tpu_custom_call.1} parent=11 // pred_check_branch
          %178 = sbr.rel (%p176) target = $region16
        $region15: #{tpu_custom_call.1} parent=11 // pred_region
          _
        $region16: #{tpu_custom_call.1} parent=11 // pred_fallthru
          _
        // Predicated region
        $region17: #{tpu_custom_call.1} parent=11 // pred_check
          %p179 = pneg %p109
        $region18: #{tpu_custom_call.1} parent=11 // pred_check_branch
          %181 = sbr.rel (%p179) target = $region20
        $region19: #{tpu_custom_call.1} parent=11 // pred_region
          _
        $region20: #{tpu_custom_call.1} parent=11 // pred_fallthru
          _
      $region12: #{tpu_custom_call.1} parent=5 // pred_fallthru
        _
      %p182 = scmp.lt.s32.totalorder %s15, 2
      // Predicated region
      $region21: #{tpu_custom_call.1} parent=5 // pred_check
        %p183 = pneg %p182
      $region22: #{tpu_custom_call.1} parent=5 // pred_check_branch
        %185 = sbr.rel (%p183) target = $region24
      $region23: #{tpu_custom_call.1} parent=5 // pred_region
        // Predicated region
        $region25: #{tpu_custom_call.1} parent=23 // pred_check
          %p186 = pneg %p35
        $region26: #{tpu_custom_call.1} parent=23 // pred_check_branch
          %188 = sbr.rel (%p186) target = $region28
        $region27: #{tpu_custom_call.1} parent=23 // pred_region
          %s189 = smul.u32 3, %s15
          %p190 = scmp.lt.s32.totalorder %s189, 5
          %s191 = scalar_select %p190, %s189, 5
          %s192 = smul.addr %s191, 8
          %s193 = scalar_lea.vmem %s0, %s192
          %s194 = smul.u32 3, %s15
        $region28: #{tpu_custom_call.1} parent=23 // pred_fallthru
          _
        // Predicated region
        $region29: #{tpu_custom_call.1} parent=23 // pred_check
          %p195 = pneg %p61
        $region30: #{tpu_custom_call.1} parent=23 // pred_check_branch
          %197 = sbr.rel (%p195) target = $region32
        $region31: #{tpu_custom_call.1} parent=23 // pred_region
          %s198 = smul.u32 3, %s15
          %p199 = scmp.lt.s32.totalorder %s198, 5
          %s200 = scalar_select %p199, %s198, 5
          %s201 = smul.addr %s200, 8
          %s202 = scalar_lea.vmem %s1, %s201
          %s203 = smul.u32 3, %s15
        $region32: #{tpu_custom_call.1} parent=23 // pred_fallthru
          _
      $region24: #{tpu_custom_call.1} parent=5 // pred_fallthru
        _
      %p204 = scmp.le.s32.totalorder 1, %s15
      %p205 = scmp.lt.s32.totalorder %s15, 3
      %p206 = pnand %p204, %p205
      %p207 = pneg %p206
      // Predicated region
      $region33: #{tpu_custom_call.1} parent=5 // pred_check
        _
      $region34: #{tpu_custom_call.1} parent=5 // pred_check_branch
        %209 = sbr.rel (%p206) target = $region36
      $region35: #{tpu_custom_call.1} parent=5 // pred_region
        %s210 = ssub.s32 %s15, 1
        %s211 = smul.u32 3, %s20
        %p212 = scmp.lt.s32.totalorder %s211, 5
        %s213 = scalar_select %p212, %s211, 5
        %s214 = smul.addr %s213, 8
        %s215 = scalar_lea.vmem %s0, %s214
        %p216 = pneg %p41
        %p217 = pneg %p38
        %s218 = smul.u32 3, %s20
        %p219 = scmp.lt.s32.totalorder %s218, 5
        %s220 = scalar_select %p219, %s218, 5
        %s221 = smul.addr %s220, 8
        %s222 = scalar_lea.vmem %s1, %s221
        %p223 = pneg %p67
        %p224 = pneg %p64
        %p225 = pneg %p88
        %p226 = pneg %p85
        %p227 = pneg %p109
        %p228 = pneg %p106
        %p229 = pneg %p135
        %p230 = pneg %p132
        %s231 = smul.u32 3, %s20
        %p232 = scmp.lt.s32.totalorder %s231, 5
        %s233 = scalar_select %p232, %s231, 5
        %s234 = smul.addr %s233, 8
        %s235 = scalar_lea.vmem %s4, %s234
        %p236 = pneg %p161
        %p237 = pneg %p158
        %s238 = sand.u32 %s148, 1
        %s239 = scalar_lea.sflag [#allocation3], %s238
        %s240 = sand.u32 %s148, 1
        %s241 = smul.addr %s240, 24
        %s242 = scalar_lea.vmem [#allocation2], %s241
        %s243 = smul.u32 3, %s20
        %p244 = scmp.lt.s32.totalorder %s243, 5
        %s245 = scalar_select %p244, %s243, 5
        %s246 = smul.addr %s245, 8
        %s247 = scalar_lea.vmem %s0, %s246
        %s248 = smul.u32 3, %s20
        %s249 = smul.u32 3, %s20
        %p250 = scmp.lt.s32.totalorder %s249, 5
        %s251 = scalar_select %p250, %s249, 5
        %s252 = smul.addr %s251, 8
        %s253 = scalar_lea.vmem %s1, %s252
        %s254 = smul.u32 3, %s20
        %s255 = smul.u32 3, %s20
        %p256 = scmp.lt.s32.totalorder %s255, 5
        %s257 = scalar_select %p256, %s255, 5
        %s258 = smul.addr %s257, 8
        %s259 = scalar_lea.vmem %s4, %s258
        %s260 = smul.u32 3, %s20
        %s261 = smul.u32 3, %s20
        %v262 = vld [vmem:[%s2] sm:$0xff]
        %v263 = vld [vmem:[%s2 + $0x8] sm:$0xff]
        %v264 = vlaneseq
        %v265 = vand.u32 %v264, 127
        %v266 = vld [vmem:[%s247] sm:$0xff]
        %v267 = vld [vmem:[%s247 + $0x8] sm:$0xff]
        %v268 = vld [vmem:[%s247 + $0x10] sm:$0xff]
        %269 = vset.pattern.permute.xlu0 0
        %270 = vperm.xlu0 %269, %v266
        %v271 = vpop.permute.xlu0 %270
        %272 = vset.pattern.permute.xlu0 0
        %273 = vperm.xlu0 %272, %v267
        %v274 = vpop.permute.xlu0 %273
        %275 = vset.pattern.permute.xlu0 0
        %276 = vperm.xlu0 %275, %v268
        %v277 = vpop.permute.xlu0 %276
        %vm278 = vcmp.eq.s32.totalorder %v271, %v265
        %vm279 = vcmp.eq.s32.totalorder %v274, %v265
        %vm280 = vcmp.eq.s32.totalorder %v277, %v265
        %v281 = vsel %vm278, 1, 0
        %v282 = vsel %vm279, 1, 0
        %v283 = vsel %vm280, 1, 0
        %v284 = vcvt.s32.f32 %v281
        %v285 = vcvt.s32.f32 %v282
        %v286 = vcvt.s32.f32 %v283
        %287 = vset.pattern.permute.xlu0 1
        %288 = vperm.xlu0 %287, %v266
        %v289 = vpop.permute.xlu0 %288
        %290 = vset.pattern.permute.xlu0 1
        %291 = vperm.xlu0 %290, %v267
        %v292 = vpop.permute.xlu0 %291
        %293 = vset.pattern.permute.xlu0 1
        %294 = vperm.xlu0 %293, %v268
        %v295 = vpop.permute.xlu0 %294
        %vm296 = vcmp.eq.s32.totalorder %v289, %v265
        %vm297 = vcmp.eq.s32.totalorder %v292, %v265
        %vm298 = vcmp.eq.s32.totalorder %v295, %v265
        %v299 = vsel %vm296, 1, 0
        %v300 = vsel %vm297, 1, 0
        %v301 = vsel %vm298, 1, 0
        %v302 = vcvt.s32.f32 %v299
        %v303 = vcvt.s32.f32 %v300
        %v304 = vcvt.s32.f32 %v301
        %vm305 = vcmask 130048
        %v307 = vsel %vm305, %v284, 0
        %v310 = vsel %vm305, %v285, 0
        %v313 = vsel %vm305, %v286, 0
        %315 = vmatprep.subr.mxu0 0.0
        %316 = vmatpush1.msra.mxu0 %v262
        %317 = vmatprep.subr.mxu0 0.0
        %318 = vmatpush1.msra.mxu0 %v263
        %319 = vmatprep.subr.mxu0 0.0
        %320 = vmatpush1.msra.mxu0 0.0
        %321 = vmatprep.subr.mxu0 0.0
        %322 = vmatpush1.msra.mxu0 0.0
        %323 = vmatprep.subr.mxu0 0.0
        %324 = vmatpush1.msra.mxu0 0.0
        %325 = vmatprep.subr.mxu0 0.0
        %326 = vmatpush1.msra.mxu0 0.0
        %327 = vmatprep.subr.mxu0 0.0
        %328 = vmatpush1.msra.mxu0 0.0
        %329 = vmatprep.subr.mxu0 0.0
        %330 = vmatpush1.msra.mxu0 0.0
        %331 = vmatprep.subr.mxu0 0.0
        %332 = vmatpush1.msra.mxu0 0.0
        %333 = vmatprep.subr.mxu0 0.0
        %334 = vmatpush1.msra.mxu0 0.0
        %335 = vmatprep.subr.mxu0 0.0
        %336 = vmatpush1.msra.mxu0 0.0
        %337 = vmatprep.subr.mxu0 0.0
        %338 = vmatpush1.msra.mxu0 0.0
        %339 = vmatprep.subr.mxu0 0.0
        %340 = vmatpush1.msra.mxu0 0.0
        %341 = vmatprep.subr.mxu0 0.0
        %342 = vmatpush1.msra.mxu0 0.0
        %343 = vmatprep.subr.mxu0 0.0
        %344 = vmatpush1.msra.mxu0 0.0
        %345 = vmatprep.subr.mxu0 0.0
        %346 = vmatpush1.msra.mxu0 0.0
        %347 = vmatprep.subr.mxu0 0.0
        %348 = vmatpush1.msra.mxu0 0.0
        %349 = vmatprep.subr.mxu0 0.0
        %350 = vmatpush1.msra.mxu0 0.0
        %351 = vmatprep.subr.mxu0 0.0
        %352 = vmatpush1.msra.mxu0 0.0
        %353 = vmatprep.subr.mxu0 0.0
        %354 = vmatpush1.msra.mxu0 0.0
        %355 = vmatprep.subr.mxu0 0.0
        %356 = vmatpush1.msra.mxu0 0.0
        %357 = vmatprep.subr.mxu0 0.0
        %358 = vmatpush1.msra.mxu0 0.0
        %359 = vmatprep.subr.mxu0 0.0
        %360 = vmatpush1.msra.mxu0 0.0
        %361 = vmatprep.subr.mxu0 0.0
        %362 = vmatpush1.msra.mxu0 0.0
        %363 = vmatprep.subr.mxu0 0.0
        %364 = vmatpush1.msra.mxu0 0.0
        %365 = vmatprep.subr.mxu0 0.0
        %366 = vmatpush1.msra.mxu0 0.0
        %367 = vmatprep.subr.mxu0 0.0
        %368 = vmatpush1.msra.mxu0 0.0
        %369 = vmatprep.subr.mxu0 0.0
        %370 = vmatpush1.msra.mxu0 0.0
        %371 = vmatprep.subr.mxu0 0.0
        %372 = vmatpush1.msra.mxu0 0.0
        %373 = vmatprep.subr.mxu0 0.0
        %374 = vmatpush1.msra.mxu0 0.0
        %375 = vmatprep.subr.mxu0 0.0
        %376 = vmatpush1.msra.mxu0 0.0
        %377 = vmatprep.subr.mxu0 0.0
        %378 = vmatpush1.msra.mxu0 0.0
        %379 = vmatprep.mubr.f32.mxu0 0.0
        %380 = vmatmul.mubr.f32.gmra.mrb[0].mxu0 %v307
        %v381 = vpop.f32.mrb[0].mxu0
        %v382 = vadd.f32 0.0, %v381
        %v383 = vpop.f32.mrb[0].mxu0
        %384 = vmatprep.mubr.f32.mxu0 0.0
        %385 = vmatmul.mubr.f32.gmra.mrb[0].mxu0 %v310
        %v386 = vpop.f32.mrb[0].mxu0
        %v387 = vadd.f32 0.0, %v386
        %v388 = vpop.f32.mrb[0].mxu0
        %389 = vmatprep.mubr.f32.mxu0 0.0
        %390 = vmatmul.mubr.f32.gmra.mrb[0].mxu0 %v313
        %v391 = vpop.f32.mrb[0].mxu0
        %v392 = vadd.f32 0.0, %v391
        %v393 = vpop.f32.mrb[0].mxu0
        %394 = vdwg.mxu0
        %v396 = vsel %vm305, %v302, 0
        %v399 = vsel %vm305, %v303, 0
        %v402 = vsel %vm305, %v304, 0
        %404 = vmatprep.subr.mxu0 0.0
        %405 = vmatpush1.msra.mxu0 %v262
        %406 = vmatprep.subr.mxu0 0.0
        %407 = vmatpush1.msra.mxu0 %v263
        %408 = vmatprep.subr.mxu0 0.0
        %409 = vmatpush1.msra.mxu0 0.0
        %410 = vmatprep.subr.mxu0 0.0
        %411 = vmatpush1.msra.mxu0 0.0
        %412 = vmatprep.subr.mxu0 0.0
        %413 = vmatpush1.msra.mxu0 0.0
        %414 = vmatprep.subr.mxu0 0.0
        %415 = vmatpush1.msra.mxu0 0.0
        %416 = vmatprep.subr.mxu0 0.0
        %417 = vmatpush1.msra.mxu0 0.0
        %418 = vmatprep.subr.mxu0 0.0
        %419 = vmatpush1.msra.mxu0 0.0
        %420 = vmatprep.subr.mxu0 0.0
        %421 = vmatpush1.msra.mxu0 0.0
        %422 = vmatprep.subr.mxu0 0.0
        %423 = vmatpush1.msra.mxu0 0.0
        %424 = vmatprep.subr.mxu0 0.0
        %425 = vmatpush1.msra.mxu0 0.0
        %426 = vmatprep.subr.mxu0 0.0
        %427 = vmatpush1.msra.mxu0 0.0
        %428 = vmatprep.subr.mxu0 0.0
        %429 = vmatpush1.msra.mxu0 0.0
        %430 = vmatprep.subr.mxu0 0.0
        %431 = vmatpush1.msra.mxu0 0.0
        %432 = vmatprep.subr.mxu0 0.0
        %433 = vmatpush1.msra.mxu0 0.0
        %434 = vmatprep.subr.mxu0 0.0
        %435 = vmatpush1.msra.mxu0 0.0
        %436 = vmatprep.subr.mxu0 0.0
        %437 = vmatpush1.msra.mxu0 0.0
        %438 = vmatprep.subr.mxu0 0.0
        %439 = vmatpush1.msra.mxu0 0.0
        %440 = vmatprep.subr.mxu0 0.0
        %441 = vmatpush1.msra.mxu0 0.0
        %442 = vmatprep.subr.mxu0 0.0
        %443 = vmatpush1.msra.mxu0 0.0
        %444 = vmatprep.subr.mxu0 0.0
        %445 = vmatpush1.msra.mxu0 0.0
        %446 = vmatprep.subr.mxu0 0.0
        %447 = vmatpush1.msra.mxu0 0.0
        %448 = vmatprep.subr.mxu0 0.0
        %449 = vmatpush1.msra.mxu0 0.0
        %450 = vmatprep.subr.mxu0 0.0
        %451 = vmatpush1.msra.mxu0 0.0
        %452 = vmatprep.subr.mxu0 0.0
        %453 = vmatpush1.msra.mxu0 0.0
        %454 = vmatprep.subr.mxu0 0.0
        %455 = vmatpush1.msra.mxu0 0.0
        %456 = vmatprep.subr.mxu0 0.0
        %457 = vmatpush1.msra.mxu0 0.0
        %458 = vmatprep.subr.mxu0 0.0
        %459 = vmatpush1.msra.mxu0 0.0
        %460 = vmatprep.subr.mxu0 0.0
        %461 = vmatpush1.msra.mxu0 0.0
        %462 = vmatprep.subr.mxu0 0.0
        %463 = vmatpush1.msra.mxu0 0.0
        %464 = vmatprep.subr.mxu0 0.0
        %465 = vmatpush1.msra.mxu0 0.0
        %466 = vmatprep.subr.mxu0 0.0
        %467 = vmatpush1.msra.mxu0 0.0
        %468 = vmatprep.mubr.f32.mxu0 0.0
        %469 = vmatmul.mubr.f32.gmra.mrb[0].mxu0 %v396
        %v470 = vpop.f32.mrb[0].mxu0
        %v471 = vadd.f32 0.0, %v470
        %v472 = vpop.f32.mrb[0].mxu0
        %473 = vmatprep.mubr.f32.mxu0 0.0
        %474 = vmatmul.mubr.f32.gmra.mrb[0].mxu0 %v399
        %v475 = vpop.f32.mrb[0].mxu0
        %v476 = vadd.f32 0.0, %v475
        %v477 = vpop.f32.mrb[0].mxu0
        %478 = vmatprep.mubr.f32.mxu0 0.0
        %479 = vmatmul.mubr.f32.gmra.mrb[0].mxu0 %v402
        %v480 = vpop.f32.mrb[0].mxu0
        %v481 = vadd.f32 0.0, %v480
        %v482 = vpop.f32.mrb[0].mxu0
        %483 = vdwg.mxu0
        %v484 = vld [vmem:[%s253] sm:$0xff]
        %v485 = vld [vmem:[%s253 + $0x8] sm:$0xff]
        %v486 = vld [vmem:[%s253 + $0x10] sm:$0xff]
        %490 = vrot.lane.b32.xlu0 %v471, 32
        %v491 = vpop.permute.xlu0 %490
        %492 = vrot.lane.b32.xlu0 %v476, 32
        %v493 = vpop.permute.xlu0 %492
        %494 = vrot.lane.b32.xlu0 %v481, 32
        %v495 = vpop.permute.xlu0 %494
        %502 = vrot.lane.b32.xlu0 %v484, 64
        %v503 = vpop.permute.xlu0 %502
        %504 = vrot.lane.b32.xlu0 %v485, 64
        %v505 = vpop.permute.xlu0 %504
        %506 = vrot.lane.b32.xlu0 %v486, 64
        %v507 = vpop.permute.xlu0 %506
        %vm511 = vcmask 261120
        %v512 = vsel %vm511, %v382, %v491
        %v513 = vsel %vm511, %v387, %v493
        %v514 = vsel %vm511, %v392, %v495
        %vm515 = vcmask 523264
        %v516 = vsel %vm515, %v512, %v503
        %v517 = vsel %vm515, %v513, %v505
        %v518 = vsel %vm515, %v514, %v507
        %vm519 = vcmask 654336
        %520 = vst.msk [vmem:[%s242] sm:$0xff] %vm519, %v516
        %521 = vst.msk [vmem:[%s242 + $0x8] sm:$0xff] %vm519, %v517
        %522 = vst.msk [vmem:[%s242 + $0x10] sm:$0xff] %vm519, %v518
        %v523 = vld [vmem:[%s3] sm:$0xff]
        %v524 = vld [vmem:[%s3 + $0x8] sm:$0xff]
        %v525 = vld [vmem:[%s3 + $0x10] sm:$0xff]
        %v526 = vld [vmem:[%s3 + $0x18] sm:$0xff]
        %v527 = vld [vmem:[%s3 + $0x20] sm:$0xff]
        %v528 = vld [vmem:[%s3 + $0x28] sm:$0xff]
        %v529 = vld [vmem:[%s3 + $0x30] sm:$0xff]
        %v530 = vld [vmem:[%s3 + $0x38] sm:$0xff]
        %v531 = vld [vmem:[%s3 + $0x40] sm:$0xff]
        %v532 = vld [vmem:[%s3 + $0x48] sm:$0xff]
        %v534 = vsel %vm519, %v516, 0
        %v537 = vsel %vm519, %v517, 0
        %v540 = vsel %vm519, %v518, 0
        %542 = vmatprep.subr.mxu0 0.0
        %543 = vmatpush1.msra.mxu0 %v523
        %544 = vmatprep.subr.mxu0 0.0
        %545 = vmatpush1.msra.mxu0 %v524
        %546 = vmatprep.subr.mxu0 0.0
        %547 = vmatpush1.msra.mxu0 %v525
        %548 = vmatprep.subr.mxu0 0.0
        %549 = vmatpush1.msra.mxu0 %v526
        %550 = vmatprep.subr.mxu0 0.0
        %551 = vmatpush1.msra.mxu0 %v527
        %552 = vmatprep.subr.mxu0 0.0
        %553 = vmatpush1.msra.mxu0 %v528
        %554 = vmatprep.subr.mxu0 0.0
        %555 = vmatpush1.msra.mxu0 %v529
        %556 = vmatprep.subr.mxu0 0.0
        %557 = vmatpush1.msra.mxu0 %v530
        %558 = vmatprep.subr.mxu0 0.0
        %559 = vmatpush1.msra.mxu0 %v531
        %560 = vmatprep.subr.mxu0 0.0
        %561 = vmatpush1.msra.mxu0 %v532
        %562 = vmatprep.subr.mxu0 0.0
        %563 = vmatpush1.msra.mxu0 0.0
        %564 = vmatprep.subr.mxu0 0.0
        %565 = vmatpush1.msra.mxu0 0.0
        %566 = vmatprep.subr.mxu0 0.0
        %567 = vmatpush1.msra.mxu0 0.0
        %568 = vmatprep.subr.mxu0 0.0
        %569 = vmatpush1.msra.mxu0 0.0
        %570 = vmatprep.subr.mxu0 0.0
        %571 = vmatpush1.msra.mxu0 0.0
        %572 = vmatprep.subr.mxu0 0.0
        %573 = vmatpush1.msra.mxu0 0.0
        %574 = vmatprep.subr.mxu0 0.0
        %575 = vmatpush1.msra.mxu0 0.0
        %576 = vmatprep.subr.mxu0 0.0
        %577 = vmatpush1.msra.mxu0 0.0
        %578 = vmatprep.subr.mxu0 0.0
        %579 = vmatpush1.msra.mxu0 0.0
        %580 = vmatprep.subr.mxu0 0.0
        %581 = vmatpush1.msra.mxu0 0.0
        %582 = vmatprep.subr.mxu0 0.0
        %583 = vmatpush1.msra.mxu0 0.0
        %584 = vmatprep.subr.mxu0 0.0
        %585 = vmatpush1.msra.mxu0 0.0
        %586 = vmatprep.subr.mxu0 0.0
        %587 = vmatpush1.msra.mxu0 0.0
        %588 = vmatprep.subr.mxu0 0.0
        %589 = vmatpush1.msra.mxu0 0.0
        %590 = vmatprep.subr.mxu0 0.0
        %591 = vmatpush1.msra.mxu0 0.0
        %592 = vmatprep.subr.mxu0 0.0
        %593 = vmatpush1.msra.mxu0 0.0
        %594 = vmatprep.subr.mxu0 0.0
        %595 = vmatpush1.msra.mxu0 0.0
        %596 = vmatprep.subr.mxu0 0.0
        %597 = vmatpush1.msra.mxu0 0.0
        %598 = vmatprep.subr.mxu0 0.0
        %599 = vmatpush1.msra.mxu0 0.0
        %600 = vmatprep.subr.mxu0 0.0
        %601 = vmatpush1.msra.mxu0 0.0
        %602 = vmatprep.subr.mxu0 0.0
        %603 = vmatpush1.msra.mxu0 0.0
        %604 = vmatprep.subr.mxu0 0.0
        %605 = vmatpush1.msra.mxu0 0.0
        %606 = vmatprep.mubr.f32.mxu0 0.0
        %607 = vmatmul.mubr.f32.gmra.mrb[0].mxu0 %v534
        %v608 = vpop.f32.mrb[0].mxu0
        %v609 = vadd.f32 0.0, %v608
        %v610 = vpop.f32.mrb[0].mxu0
        %611 = vmatprep.mubr.f32.mxu0 0.0
        %612 = vmatmul.mubr.f32.gmra.mrb[0].mxu0 %v537
        %v613 = vpop.f32.mrb[0].mxu0
        %v614 = vadd.f32 0.0, %v613
        %v615 = vpop.f32.mrb[0].mxu0
        %616 = vmatprep.mubr.f32.mxu0 0.0
        %617 = vmatmul.mubr.f32.gmra.mrb[0].mxu0 %v540
        %v618 = vpop.f32.mrb[0].mxu0
        %v619 = vadd.f32 0.0, %v618
        %v620 = vpop.f32.mrb[0].mxu0
        %621 = vdwg.mxu0
        %vm622 = vcmask 31744
        %623 = vst.msk [vmem:[%s259] sm:$0xff] %vm622, %v609
        %624 = vst.msk [vmem:[%s259 + $0x8] sm:$0xff] %vm622, %v614
        %625 = vst.msk [vmem:[%s259 + $0x10] sm:$0xff] %vm622, %v619
        %s626 = smul.u32 3, %s20
        %p627 = scmp.lt.s32.totalorder %s626, 5
        %s628 = scalar_select %p627, %s626, 5
        %s629 = smul.addr %s628, 8
        %s630 = scalar_lea.vmem %s4, %s629
        %s631 = sand.u32 %s148, 1
        %s632 = scalar_lea.sflag [#allocation3], %s631
        %s633 = sand.u32 %s148, 1
        %s634 = smul.addr %s633, 24
        %s635 = scalar_lea.vmem [#allocation2], %s634
        // Predicated region
        $region37: #{tpu_custom_call.1} parent=35 // pred_check
          %p636 = pneg %p132
        $region38: #{tpu_custom_call.1} parent=35 // pred_check_branch
          %638 = sbr.rel (%p636) target = $region40
        $region39: #{tpu_custom_call.1} parent=35 // pred_region
          %s639 = smul.u32 3, %s20
        $region40: #{tpu_custom_call.1} parent=35 // pred_fallthru
          _
        // Predicated region
        $region41: #{tpu_custom_call.1} parent=35 // pred_check
          %p640 = pneg %p158
        $region42: #{tpu_custom_call.1} parent=35 // pred_check_branch
          %642 = sbr.rel (%p640) target = $region44
        $region43: #{tpu_custom_call.1} parent=35 // pred_region
          %s643 = smul.u32 3, %s20
          %s645 = ssub.s32 384, 384
          %646 = vsyncadd %s632, %s645
          %s647 = smul.addr %s643, 128
          %s648 = scalar_lea.hbm %s5, %s647
          %s649 = sshll.u32 %s635, 4
          %s650 = int_to_ptr.vmem [resolvable:$true] %s649
          %655 = dma.vmem_to_hbm [thread:$0]  %s650, 384, %s648, %s632, 128, 128, 8
        $region44: #{tpu_custom_call.1} parent=35 // pred_fallthru
          _
      $region36: #{tpu_custom_call.1} parent=5 // pred_fallthru
        _
      %p656 = scmp.le.s32.totalorder 2, %s15
      // Predicated region
      $region45: #{tpu_custom_call.1} parent=5 // pred_check
        %p657 = pneg %p656
      $region46: #{tpu_custom_call.1} parent=5 // pred_check_branch
        %659 = sbr.rel (%p657) target = $region48
      $region47: #{tpu_custom_call.1} parent=5 // pred_region
        %s660 = ssub.s32 %s15, 2
        // Predicated region
        $region49: #{tpu_custom_call.1} parent=47 // pred_check
          %p661 = pneg %p138
        $region50: #{tpu_custom_call.1} parent=47 // pred_check_branch
          %663 = sbr.rel (%p661) target = $region52
        $region51: #{tpu_custom_call.1} parent=47 // pred_region
          %s664 = smul.u32 3, %s21
          %p665 = scmp.lt.s32.totalorder %s664, 5
          %s666 = scalar_select %p665, %s664, 5
          %s667 = smul.addr %s666, 8
          %s668 = scalar_lea.vmem %s4, %s667
        $region52: #{tpu_custom_call.1} parent=47 // pred_fallthru
          _
        // Predicated region
        $region53: #{tpu_custom_call.1} parent=47 // pred_check
          %p669 = pneg %p164
        $region54: #{tpu_custom_call.1} parent=47 // pred_check_branch
          %671 = sbr.rel (%p669) target = $region56
        $region55: #{tpu_custom_call.1} parent=47 // pred_region
          %s672 = sand.u32 %s149, 1
          %s673 = scalar_lea.sflag [#allocation3], %s672
          %s674 = sand.u32 %s149, 1
          %s675 = smul.addr %s674, 24
          %s676 = scalar_lea.vmem [#allocation2], %s675
          %677 = dma.done %s673, 384
        $region56: #{tpu_custom_call.1} parent=47 // pred_fallthru
          _
      $region48: #{tpu_custom_call.1} parent=5 // pred_fallthru
        _
    $region6: #{tpu_custom_call.1} parent=1 // loop_footer
      %s19 = sadd.s32 1, %s15
    $region7: #{tpu_custom_call.1} parent=1 // loop_footer_branch
      %14 = sbr.rel target = $region3
    $region8: #{tpu_custom_call.1} parent=1 // loop_exit
      _
    %678 = vsyncpa [#allocation3], 1
    %s679 = scalar_lea.sflag [#allocation3], 1
    %680 = vsyncpa %s679, 1

</llo_original>
